<compile_context>
chip_gen: v5e
topology: v5e:2x2
jax: 0.10.0
libtpu: 0.0.40
codegen_flags: <defaults>
</compile_context>

<pallas_src>
import functools

import jax
import jax.numpy as jnp
from jax import lax
from jax.experimental import pallas as pl
from jax.experimental.pallas import tpu as pltpu


def _round_up(x, m):
    return (x + m - 1) // m * m


def _choose_tiles(R, P, itemsize, row_align, *, target_block_bytes=2 * 1024 * 1024,
                  max_tile_pix=2048, max_tile_rows=1024):
    """Pick (TR, TP).

    TP: split P as evenly as possible into 128-aligned chunks <= max_tile_pix
        (minimizes masked/padded columns for awkward H*W).
    TR: sized so each input block is ~target_block_bytes (>= ~2 MiB keeps the
        ~0.35us per-grid-step overhead negligible), aligned to row_align.
        Forced so the parallel row axis has >= 2 steps whenever R allows, so
        v7x's two TensorCores both get work.
    """
    nj = pl.cdiv(P, max_tile_pix)
    TP = min(_round_up(pl.cdiv(P, nj), 128), _round_up(P, 128))
    rows_budget = max(row_align,
                      (target_block_bytes // (TP * itemsize)) // row_align * row_align)
    TR = min(rows_budget, max_tile_rows, _round_up(R, row_align))
    if R >= 2 * row_align and pl.cdiv(R, TR) < 2:
        TR = _round_up(pl.cdiv(R, 2), row_align)
    return TR, TP


def _celoss_kernel(pred_ref, gt_ref, bce_out_ref, pond_out_ref,
                   acc_vb_ref, acc_bce_ref, *,
                   n_rows, n_pix, tile_rows, tile_pix, ragged_rows, ragged_cols):
    # pred_ref / gt_ref: (TR, TP) tile of the (N*C, H*W) slab.
    # acc_vb_ref / acc_bce_ref: (TR, 128) f32 per-lane running sums across spatial tiles.
    # bce_out_ref / pond_out_ref: (1, 8, 128) per-row-tile partial outputs.
    #
    # Grid ids are read at the top level (NOT inside pl.when bodies) and
    # captured by the closures below.
    i = pl.program_id(0)
    j = pl.program_id(1)
    last_j = pl.num_programs(1) - 1

    @pl.when(j == 0)
    def _init():
        acc_vb_ref[...] = jnp.zeros_like(acc_vb_ref)
        acc_bce_ref[...] = jnp.zeros_like(acc_bce_ref)

    x = pred_ref[...].astype(jnp.float32)
    y = gt_ref[...].astype(jnp.float32)

    if ragged_cols:
        # Mask the ragged spatial tail BEFORE the transcendental math: the
        # out-of-bounds lanes contain garbage.  (x=1e4, y=1.0) contributes
        # exactly 0 to both the BCE sum and the negative-label count.
        col = j * tile_pix + lax.broadcasted_iota(jnp.int32, x.shape, 1)
        col_ok = col < n_pix
        x = jnp.where(col_ok, x, 1e4)
        y = jnp.where(col_ok, y, 1.0)

    # Negative-label mask; positives are the complement (recovered at finalize).
    vb = (y <= 0.0).astype(jnp.float32)
    # Numerically-stable BCEWithLogits per element.
    bce = jnp.maximum(x, 0.0) - x * y + jnp.log1p(jnp.exp(-jnp.abs(x)))

    # Per-lane (VALU-only) partial sums in the hot loop; the cross-lane XLU
    # reduce is deferred to the finalize step (once per row tile).
    vb_part = vb[:, 0:128]
    bce_part = bce[:, 0:128]
    for c in range(1, tile_pix // 128):
        vb_part = vb_part + vb[:, c * 128:(c + 1) * 128]
        bce_part = bce_part + bce[:, c * 128:(c + 1) * 128]
    acc_vb_ref[...] += vb_part
    acc_bce_ref[...] += bce_part

    @pl.when(j == last_j)
    def _finalize():
        sum_vb = jnp.sum(acc_vb_ref[...], axis=1, keepdims=True)     # (TR,1) true neg counts
        sum_bce = jnp.sum(acc_bce_ref[...], axis=1, keepdims=True)   # (TR,1) bce row sums
        sum_vs = jnp.float32(n_pix) - sum_vb                         # masked cols -> vb=0
        nb = sum_vb + 1.0
        ns = sum_vs + 1.0
        total = nb + ns + 1.0
        # Row-wise spatial sum of pond = sum_vs/ps + sum_vb/pb, ps=ns/total, pb=nb/total.
        pond_rows = sum_vs * (total / ns) + sum_vb * (total / nb)

        if ragged_rows:
            # Drop rows beyond the real row count (garbage rows of the last tile).
            row = i * tile_rows + lax.broadcasted_iota(jnp.int32, sum_vb.shape, 0)
            valid = row < n_rows
            pond_rows = jnp.where(valid, pond_rows, 0.0)
            sum_bce = jnp.where(valid, sum_bce, 0.0)

        bce_out_ref[...] = jnp.full(bce_out_ref.shape, jnp.sum(sum_bce), jnp.float32)
        pond_out_ref[...] = jnp.full(pond_out_ref.shape, jnp.sum(pond_rows), jnp.float32)


def celoss_pallas(pred, gt):
    """pred, gt: (N, C, H, W) arrays (f32 or bf16; pass narrow dtypes straight
    through -- the kernel upcasts per tile).  Returns scalar f32 loss."""
    assert pred.shape == gt.shape
    N, C, H, W = pred.shape
    R, P = N * C, H * W
    pred2 = pred.reshape(R, P)
    gt2 = gt.reshape(R, P)

    item_p = jnp.dtype(pred.dtype).itemsize
    item_g = jnp.dtype(gt.dtype).itemsize
    # Byte budget uses the wider input; sublane alignment follows the narrowest
    # (bf16 packs 2 rows per sublane -> 16-row alignment, int8 -> 32).
    row_align = max(8, 32 // max(1, min(item_p, item_g)))
    TR, TP = _choose_tiles(R, P, max(item_p, item_g), row_align)
    ni = pl.cdiv(R, TR)
    nj = pl.cdiv(P, TP)
    ragged_rows = (R % TR) != 0
    ragged_cols = (P % TP) != 0

    kernel = functools.partial(
        _celoss_kernel, n_rows=R, n_pix=P, tile_rows=TR, tile_pix=TP,
        ragged_rows=ragged_rows, ragged_cols=ragged_cols)

    # 3-deep input buffering hides DMA jitter / the finalize-writeback bubble on
    # this mem-bound kernel.  Guarded: skip on short grids or older JAX.
    use_buffered = (ni * nj) >= 4 and hasattr(pl, "Buffered")

    def in_spec(block_shape, index_map):
        if use_buffered:
            try:
                return pl.BlockSpec(block_shape, index_map, pipeline_mode=pl.Buffered(3))
            except TypeError:
                pass
        return pl.BlockSpec(block_shape, index_map)

    bce_parts, pond_parts = pl.pallas_call(
        kernel,
        out_shape=(
            jax.ShapeDtypeStruct((ni, 8, 128), jnp.float32),
            jax.ShapeDtypeStruct((ni, 8, 128), jnp.float32),
        ),
        grid_spec=pltpu.PrefetchScalarGridSpec(
            num_scalar_prefetch=0,
            grid=(ni, nj),
            in_specs=[
                in_spec((TR, TP), lambda i, j: (i, j)),
                in_spec((TR, TP), lambda i, j: (i, j)),
            ],
            out_specs=[
                pl.BlockSpec((1, 8, 128), lambda i, j: (i, 0, 0)),
                pl.BlockSpec((1, 8, 128), lambda i, j: (i, 0, 0)),
            ],
            scratch_shapes=[
                pltpu.VMEM((TR, 128), jnp.float32),
                pltpu.VMEM((TR, 128), jnp.float32),
            ],
        ),
        compiler_params=pltpu.CompilerParams(
            dimension_semantics=("parallel", "arbitrary"),
            vmem_limit_bytes=32 * 1024 * 1024,
        ),
    )(pred2, gt2)

    # Tiny final reduction over row-tile partials in plain JAX (megacore-safe).
    numel = jnp.float32(R * P)
    bce_mean = jnp.sum(bce_parts[:, 0, 0]) / numel
    pond_mean = jnp.sum(pond_parts[:, 0, 0]) / numel
    return bce_mean * pond_mean


def _celoss_ref(pred, gt):
    """Plain-JAX reference mirroring the PyTorch code (for sanity check)."""
    pred = pred.astype(jnp.float32)
    gt = gt.astype(jnp.float32)
    vb = (gt <= 0.0).astype(jnp.float32)
    vs = (gt > 0.0).astype(jnp.float32)
    nb = jnp.sum(vb, axis=(2, 3)) + 1.0
    ns = jnp.sum(vs, axis=(2, 3)) + 1.0
    total = nb + ns + 1.0
    pb = nb / total
    ps = ns / total
    bce = jnp.maximum(pred, 0.0) - pred * gt + jnp.log1p(jnp.exp(-jnp.abs(pred)))
    bce_mean = jnp.mean(bce)
    pond = vs * (1.0 / ps)[:, :, None, None] + vb * (1.0 / pb)[:, :, None, None]
    return jnp.mean(bce_mean * pond)


if __name__ == "__main__":
    key = jax.random.PRNGKey(0)
    k1, k2, k3, k4 = jax.random.split(key, 4)

    # Test 1: small, nicely-shaped inputs.
    N, C, H, W = 2, 4, 16, 16
    pred = jax.random.normal(k1, (N, C, H, W), dtype=jnp.float32)
    gt = (jax.random.uniform(k2, (N, C, H, W)) > 0.5).astype(jnp.float32)
    loss = jax.block_until_ready(celoss_pallas(pred, gt))
    ref = jax.block_until_ready(_celoss_ref(pred, gt))
    assert jnp.allclose(loss, ref, rtol=1e-4, atol=1e-5), (loss, ref)

    # Test 2: ragged shape exercising the in-kernel row/col masking path
    # (no wrapper-side padding pass).
    N2, C2, H2, W2 = 2, 3, 15, 17
    pred2 = jax.random.normal(k3, (N2, C2, H2, W2), dtype=jnp.float32)
    gt2 = (jax.random.uniform(k4, (N2, C2, H2, W2)) > 0.5).astype(jnp.float32)
    loss2 = jax.block_until_ready(celoss_pallas(pred2, gt2))
    ref2 = jax.block_until_ready(_celoss_ref(pred2, gt2))
    assert jnp.allclose(loss2, ref2, rtol=1e-4, atol=1e-5), (loss2, ref2)

    print("KERNEL_OK")
</pallas_src>

<mosaic_0001>
module attributes {stable_mosaic.version = 11 : i64} {
  func.func @_celoss_kernel(%arg0: i32, %arg1: i32, %arg2: memref<8x256xf32, #tpu.memory_space<vmem>>, %arg3: memref<8x256xf32, #tpu.memory_space<vmem>>, %arg4: memref<1x8x128xf32, #tpu.memory_space<vmem>>, %arg5: memref<1x8x128xf32, #tpu.memory_space<vmem>>, %arg6: memref<8x128xf32, #tpu.memory_space<vmem>>, %arg7: memref<8x128xf32, #tpu.memory_space<vmem>>) attributes {dimension_semantics = [#tpu.dimension_semantics<parallel>, #tpu.dimension_semantics<arbitrary>], iteration_bounds = array<i64: 1, 1>, scalar_prefetch = 0 : i64, scratch_operands = 2 : i64, tpu.core_type = #tpu.core_type<tc>, window_params = [{transform_indices = @transform_0, window_bounds = array<i64: 8, 256>}, {transform_indices = @transform_1, window_bounds = array<i64: 8, 256>}, {transform_indices = @transform_2, window_bounds = array<i64: 1, 8, 128>}, {transform_indices = @transform_3, window_bounds = array<i64: 1, 8, 128>}]} {
    %c0_i32 = arith.constant 0 : i32
    %0 = arith.cmpi eq, %arg1, %c0_i32 : i32
    %1 = arith.extui %0 : i1 to i32
    %c0_i32_0 = arith.constant 0 : i32
    %2 = arith.cmpi ne, %1, %c0_i32_0 : i32
    scf.if %2 {
      %cst_16 = arith.constant 0.000000e+00 : f32
      %34 = vector.broadcast %cst_16 : f32 to vector<8x128xf32>
      %c0_17 = arith.constant 0 : index
      %c0_18 = arith.constant 0 : index
      %35 = vector.load %arg6[%c0_17, %c0_18] : memref<8x128xf32, #tpu.memory_space<vmem>>, vector<8x128xf32>
      tpu.vector_store %arg6[%c0_17, %c0_18], %34 {strides = array<i32>} : memref<8x128xf32, #tpu.memory_space<vmem>>, vector<8x128xf32>,
      %cst_19 = arith.constant 0.000000e+00 : f32
      %36 = vector.broadcast %cst_19 : f32 to vector<8x128xf32>
      %c0_20 = arith.constant 0 : index
      %c0_21 = arith.constant 0 : index
      %37 = vector.load %arg7[%c0_20, %c0_21] : memref<8x128xf32, #tpu.memory_space<vmem>>, vector<8x128xf32>
      tpu.vector_store %arg7[%c0_20, %c0_21], %36 {strides = array<i32>} : memref<8x128xf32, #tpu.memory_space<vmem>>, vector<8x128xf32>,
    } else {
    }
    %c0 = arith.constant 0 : index
    %c0_1 = arith.constant 0 : index
    %3 = vector.load %arg2[%c0, %c0_1] : memref<8x256xf32, #tpu.memory_space<vmem>>, vector<8x256xf32>
    %c0_2 = arith.constant 0 : index
    %c0_3 = arith.constant 0 : index
    %4 = vector.load %arg3[%c0_2, %c0_3] : memref<8x256xf32, #tpu.memory_space<vmem>>, vector<8x256xf32>
    %cst = arith.constant 0.000000e+00 : f32
    %5 = vector.broadcast %cst : f32 to vector<8x256xf32>
    %6 = arith.cmpf ole, %4, %5 : vector<8x256xf32>
    %7 = arith.extui %6 : vector<8x256xi1> to vector<8x256xi32>
    %8 = arith.sitofp %7 : vector<8x256xi32> to vector<8x256xf32>
    %cst_4 = arith.constant 0.000000e+00 : f32
    %9 = vector.broadcast %cst_4 : f32 to vector<8x256xf32>
    %10 = arith.maximumf %3, %9 : vector<8x256xf32>
    %11 = arith.mulf %3, %4 : vector<8x256xf32>
    %12 = arith.subf %10, %11 : vector<8x256xf32>
    %13 = math.absf %3 : vector<8x256xf32>
    %cst_5 = arith.constant 0.000000e+00 : f32
    %14 = vector.broadcast %cst_5 : f32 to vector<8x256xf32>
    %15 = arith.subf %14, %13 : vector<8x256xf32>
    %16 = math.exp %15 : vector<8x256xf32>
    %17 = math.log1p %16 : vector<8x256xf32>
    %18 = arith.addf %12, %17 : vector<8x256xf32>
    %19 = vector.extract_strided_slice %8 {offsets = [0, 0], sizes = [8, 128], strides = [1, 1]} : vector<8x256xf32> to vector<8x128xf32>
    %20 = vector.extract_strided_slice %18 {offsets = [0, 0], sizes = [8, 128], strides = [1, 1]} : vector<8x256xf32> to vector<8x128xf32>
    %21 = vector.extract_strided_slice %8 {offsets = [0, 128], sizes = [8, 128], strides = [1, 1]} : vector<8x256xf32> to vector<8x128xf32>
    %22 = arith.addf %19, %21 : vector<8x128xf32>
    %23 = vector.extract_strided_slice %18 {offsets = [0, 128], sizes = [8, 128], strides = [1, 1]} : vector<8x256xf32> to vector<8x128xf32>
    %24 = arith.addf %20, %23 : vector<8x128xf32>
    %c0_6 = arith.constant 0 : index
    %c0_7 = arith.constant 0 : index
    %25 = vector.load %arg6[%c0_6, %c0_7] : memref<8x128xf32, #tpu.memory_space<vmem>>, vector<8x128xf32>
    %26 = arith.addf %25, %22 : vector<8x128xf32>
    %c0_8 = arith.constant 0 : index
    %c0_9 = arith.constant 0 : index
    %27 = vector.load %arg6[%c0_8, %c0_9] : memref<8x128xf32, #tpu.memory_space<vmem>>, vector<8x128xf32>
    tpu.vector_store %arg6[%c0_8, %c0_9], %26 {strides = array<i32>} : memref<8x128xf32, #tpu.memory_space<vmem>>, vector<8x128xf32>,
    %c0_10 = arith.constant 0 : index
    %c0_11 = arith.constant 0 : index
    %28 = vector.load %arg7[%c0_10, %c0_11] : memref<8x128xf32, #tpu.memory_space<vmem>>, vector<8x128xf32>
    %29 = arith.addf %28, %24 : vector<8x128xf32>
    %c0_12 = arith.constant 0 : index
    %c0_13 = arith.constant 0 : index
    %30 = vector.load %arg7[%c0_12, %c0_13] : memref<8x128xf32, #tpu.memory_space<vmem>>, vector<8x128xf32>
    tpu.vector_store %arg7[%c0_12, %c0_13], %29 {strides = array<i32>} : memref<8x128xf32, #tpu.memory_space<vmem>>, vector<8x128xf32>,
    %c0_i32_14 = arith.constant 0 : i32
    %31 = arith.cmpi eq, %arg1, %c0_i32_14 : i32
    %32 = arith.extui %31 : i1 to i32
    %c0_i32_15 = arith.constant 0 : i32
    %33 = arith.cmpi ne, %32, %c0_i32_15 : i32
    scf.if %33 {
      %c0_16 = arith.constant 0 : index
      %c0_17 = arith.constant 0 : index
      %34 = vector.load %arg6[%c0_16, %c0_17] : memref<8x128xf32, #tpu.memory_space<vmem>>, vector<8x128xf32>
      %cst_18 = arith.constant dense<0.000000e+00> : vector<8xf32>
      %35 = vector.multi_reduction <add>, %34, %cst_18 [1] : vector<8x128xf32> to vector<8xf32>
      %36 = vector.shape_cast %35 : vector<8xf32> to vector<8x1xf32>
      %c0_19 = arith.constant 0 : index
      %c0_20 = arith.constant 0 : index
      %37 = vector.load %arg7[%c0_19, %c0_20] : memref<8x128xf32, #tpu.memory_space<vmem>>, vector<8x128xf32>
      %cst_21 = arith.constant dense<0.000000e+00> : vector<8xf32>
      %38 = vector.multi_reduction <add>, %37, %cst_21 [1] : vector<8x128xf32> to vector<8xf32>
      %39 = vector.shape_cast %38 : vector<8xf32> to vector<8x1xf32>
      %cst_22 = arith.constant 2.560000e+02 : f32
      %40 = vector.broadcast %cst_22 : f32 to vector<8x1xf32>
      %41 = arith.subf %40, %36 : vector<8x1xf32>
      %cst_23 = arith.constant 1.000000e+00 : f32
      %42 = vector.broadcast %cst_23 : f32 to vector<8x1xf32>
      %43 = arith.addf %36, %42 : vector<8x1xf32>
      %cst_24 = arith.constant 1.000000e+00 : f32
      %44 = vector.broadcast %cst_24 : f32 to vector<8x1xf32>
      %45 = arith.addf %41, %44 : vector<8x1xf32>
      %46 = arith.addf %43, %45 : vector<8x1xf32>
      %cst_25 = arith.constant 1.000000e+00 : f32
      %47 = vector.broadcast %cst_25 : f32 to vector<8x1xf32>
      %48 = arith.addf %46, %47 : vector<8x1xf32>
      %49 = arith.divf %48, %45 : vector<8x1xf32>
      %50 = arith.mulf %41, %49 : vector<8x1xf32>
      %51 = arith.divf %48, %43 : vector<8x1xf32>
      %52 = arith.mulf %36, %51 : vector<8x1xf32>
      %53 = arith.addf %50, %52 : vector<8x1xf32>
      %54 = vector.shape_cast %39 : vector<8x1xf32> to vector<1x8x1xf32>
      %cst_26 = arith.constant dense<0.000000e+00> : vector<1xf32>
      %55 = vector.multi_reduction <add>, %54, %cst_26 [1, 2] : vector<1x8x1xf32> to vector<1xf32>
      %56 = vector.shape_cast %55 : vector<1xf32> to vector<1x1x1xf32>
      %57 = vector.extract %56[0, 0, 0] : f32 from vector<1x1x1xf32>
      %58 = vector.broadcast %57 : f32 to vector<1x8x128xf32>
      %c0_27 = arith.constant 0 : index
      %c0_28 = arith.constant 0 : index
      %c0_29 = arith.constant 0 : index
      %59 = vector.load %arg4[%c0_27, %c0_28, %c0_29] : memref<1x8x128xf32, #tpu.memory_space<vmem>>, vector<1x8x128xf32>
      tpu.vector_store %arg4[%c0_27, %c0_28, %c0_29], %58 {strides = array<i32>} : memref<1x8x128xf32, #tpu.memory_space<vmem>>, vector<1x8x128xf32>,
      %60 = vector.shape_cast %53 : vector<8x1xf32> to vector<1x8x1xf32>
      %cst_30 = arith.constant dense<0.000000e+00> : vector<1xf32>
      %61 = vector.multi_reduction <add>, %60, %cst_30 [1, 2] : vector<1x8x1xf32> to vector<1xf32>
      %62 = vector.shape_cast %61 : vector<1xf32> to vector<1x1x1xf32>
      %63 = vector.extract %62[0, 0, 0] : f32 from vector<1x1x1xf32>
      %64 = vector.broadcast %63 : f32 to vector<1x8x128xf32>
      %c0_31 = arith.constant 0 : index
      %c0_32 = arith.constant 0 : index
      %c0_33 = arith.constant 0 : index
      %65 = vector.load %arg5[%c0_31, %c0_32, %c0_33] : memref<1x8x128xf32, #tpu.memory_space<vmem>>, vector<1x8x128xf32>
      tpu.vector_store %arg5[%c0_31, %c0_32, %c0_33], %64 {strides = array<i32>} : memref<1x8x128xf32, #tpu.memory_space<vmem>>, vector<1x8x128xf32>,
    } else {
    }
    return
  }
  func.func @transform_0(%arg0: i32, %arg1: i32) -> (i32, i32) {
    %c0_i32 = arith.constant 0 : i32
    return %arg0, %arg1 : i32, i32
  }
  func.func @transform_1(%arg0: i32, %arg1: i32) -> (i32, i32) {
    %c0_i32 = arith.constant 0 : i32
    return %arg0, %arg1 : i32, i32
  }
  func.func @transform_2(%arg0: i32, %arg1: i32) -> (i32, i32, i32) {
    %c0_i32 = arith.constant 0 : i32
    %c0_i32_0 = arith.constant 0 : i32
    %c0_i32_1 = arith.constant 0 : i32
    return %arg0, %c0_i32, %c0_i32_0 : i32, i32, i32
  }
  func.func @transform_3(%arg0: i32, %arg1: i32) -> (i32, i32, i32) {
    %c0_i32 = arith.constant 0 : i32
    %c0_i32_0 = arith.constant 0 : i32
    %c0_i32_1 = arith.constant 0 : i32
    return %arg0, %c0_i32, %c0_i32_0 : i32, i32, i32
  }
}

</mosaic_0001>

<llo_original>
// kernel: tpu_custom_call.1
$region0: #{tpu_custom_call.1}
  #allocation0 [shape = 'u32[]', space=smem, size = 0x4, offset = 0x4, fixed_abs, tag = 'smem constant byte address 0x4 - core index']
  #allocation1 [shape = 'u32[72,128]{1,0:T(1,128)}', space=vmem, size = 0x9000, scoped, tag = 'internal scratch']
  #allocation2 [shape = 'f32[8,128]{1,0:T(8,128)}', space=vmem, size = 0x1000, scoped, tag = 'scratch operand']
  #allocation3 [shape = 'f32[8,128]{1,0:T(8,128)}', space=vmem, size = 0x1000, scoped, tag = 'scratch operand']
  %s0 = inlined_call_operand.hbm [shape: f32[8,256], index: 0, kind: input, shape index: {}]
  %s1 = inlined_call_operand.hbm [shape: f32[8,256], index: 1, kind: input, shape index: {}]
  %s2 = inlined_call_operand.hbm [shape: f32[1,8,128], index: 2, kind: output, shape index: {0}]
  %s3 = inlined_call_operand.hbm [shape: f32[1,8,128], index: 3, kind: output, shape index: {1}]
  %4 = xla_tuple %s2, %s3
  %s5 = sld [smem:[#allocation0]]
  $region42: #{tpu_custom_call.1} parent=0
    _
  %s7 = ssub.s32 1, %s5
  %s8 = scalar_select 0, %s7, %s5
  $region1: #{tpu_custom_call.1} parent=0
    #allocation4 [shape = 'u8[8192]{0}', space=vmem, size = 0x2000, scoped, tag = 'input window, operand 0, single buffered']
    #allocation5 [shape = 's32[1]{0}', space=sflag, size = 0x4, scoped, tag = 'scoped memory for tpu_custom_call.1']
    #allocation6 [shape = 's32[1]{0}', space=sflag, size = 0x4, scoped, tag = 'scoped memory for tpu_custom_call.1']
    #allocation7 [shape = 'u8[8192]{0}', space=vmem, size = 0x2000, scoped, tag = 'input window, operand 1, single buffered']
    #allocation8 [shape = 's32[1]{0}', space=sflag, size = 0x4, scoped, tag = 'scoped memory for tpu_custom_call.1']
    #allocation9 [shape = 'u8[4096]{0}', space=vmem, size = 0x1000, scoped, tag = 'output window, operand 0, single buffered']
    #allocation10 [shape = 'u8[4096]{0}', space=vmem, size = 0x1000, scoped, tag = 'output window, operand 1, single buffered']
    #allocation11 [shape = 's32[1]{0}', space=sflag, size = 0x4, scoped, tag = 'scoped memory for tpu_custom_call.1']
    %9 = vsyncpa [#allocation5], 0
    %10 = vsyncpa [#allocation8], 0
    %11 = vsyncpa [#allocation6], 0
    %12 = vsyncpa [#allocation11], 0
    // Predicated region
    $region2: #{tpu_custom_call.1} parent=1 // pred_check
      _
    $region3: #{tpu_custom_call.1} parent=1 // pred_check_branch
      %14 = sbr.rel (0) target = $region5
    $region4: #{tpu_custom_call.1} parent=1 // pred_region
      %16 = vsyncadd [#allocation5], 0
      %s18 = sshll.u32 %s0, 4
      %s19 = int_to_ptr.hbm [resolvable:$true] %s18
      %s20 = sshll.u32 [#allocation4], 4
      %s21 = int_to_ptr.vmem [resolvable:$true] %s20
      %23 = dma.hbm_to_vmem [thread:$0]  %s19, 256, %s21, [#allocation5]
    $region5: #{tpu_custom_call.1} parent=1 // pred_fallthru
      _
    // Predicated region
    $region6: #{tpu_custom_call.1} parent=1 // pred_check
      _
    $region7: #{tpu_custom_call.1} parent=1 // pred_check_branch
      %25 = sbr.rel (0) target = $region9
    $region8: #{tpu_custom_call.1} parent=1 // pred_region
      %27 = vsyncadd [#allocation8], 0
      %s29 = sshll.u32 %s1, 4
      %s30 = int_to_ptr.hbm [resolvable:$true] %s29
      %s31 = sshll.u32 [#allocation7], 4
      %s32 = int_to_ptr.vmem [resolvable:$true] %s31
      %34 = dma.hbm_to_vmem [thread:$0]  %s30, 256, %s32, [#allocation8]
    $region9: #{tpu_custom_call.1} parent=1 // pred_fallthru
      _
    // Predicated region
    $region10: #{tpu_custom_call.1} parent=1 // pred_check
      _
    $region11: #{tpu_custom_call.1} parent=1 // pred_check_branch
      %36 = sbr.rel (0) target = $region13
    $region12: #{tpu_custom_call.1} parent=1 // pred_region
      %38 = dma.done [#allocation5], 256
    $region13: #{tpu_custom_call.1} parent=1 // pred_fallthru
      _
    // Predicated region
    $region14: #{tpu_custom_call.1} parent=1 // pred_check
      _
    $region15: #{tpu_custom_call.1} parent=1 // pred_check_branch
      %40 = sbr.rel (0) target = $region17
    $region16: #{tpu_custom_call.1} parent=1 // pred_region
      %42 = dma.done [#allocation8], 256
    $region17: #{tpu_custom_call.1} parent=1 // pred_fallthru
      _
    %p43 = scmp.eq.s32.totalorder 0, 0
    // Predicated region
    $region18: #{tpu_custom_call.1} parent=1 // pred_check
      %p44 = pneg %p43
    $region19: #{tpu_custom_call.1} parent=1 // pred_check_branch
      %46 = sbr.rel (%p44) target = $region21
    $region20: #{tpu_custom_call.1} parent=1 // pred_region
      %47 = vst [vmem:[#allocation2] sm:$0xff] 0.0
      %48 = vst [vmem:[#allocation3] sm:$0xff] 0.0
    $region21: #{tpu_custom_call.1} parent=1 // pred_fallthru
      _
    %v49 = vld [vmem:[#allocation4] sm:$0xff]
    %v50 = vld [vmem:[#allocation4 + $0x8] sm:$0xff]
    %v51 = vld [vmem:[#allocation7] sm:$0xff]
    %v52 = vld [vmem:[#allocation7 + $0x8] sm:$0xff]
    %vm53 = vcmp.le.f32.partialorder %v51, 0.0
    %vm54 = vcmp.le.f32.partialorder %v52, 0.0
    %v55 = vsel %vm53, 1, 0
    %v56 = vsel %vm54, 1, 0
    %v57 = vcvt.s32.f32 %v55
    %v58 = vcvt.s32.f32 %v56
    %v59 = vmax.f32 %v49, 0.0
    %v60 = vmax.f32 %v50, 0.0
    %v61 = vmul.f32 %v49, %v51
    %v62 = vmul.f32 %v50, %v52
    %v63 = vsub.f32 %v59, %v61
    %v64 = vsub.f32 %v60, %v62
    %v65 = vand.u32 2147483647, %v49
    %v66 = vand.u32 2147483647, %v50
    %v67 = vsub.f32 0.0, %v65
    %v68 = vsub.f32 0.0, %v66
    %v69 = vmul.f32 %v67, 1.442695
    %v70 = vpow.pop %v69
    %v71 = vmul.f32 %v68, 1.442695
    %v72 = vpow.pop %v71
    %v73 = vadd.f32 %v70, 1.0
    %v74 = vlog2.pop %v73
    %v75 = vmul.f32 %v74, 0.6931472
    %v76 = vmul.f32 -0.5, %v70
    %v77 = vadd.f32 %v76, 1.0
    %v78 = vmul.f32 %v77, %v70
    %v79 = vand.u32 2147483647, %v70
    %vm80 = vcmp.lt.f32.partialorder %v79, 0.0004427343
    %v81 = vsel %vm80, %v78, %v75
    %v82 = vadd.f32 %v72, 1.0
    %v83 = vlog2.pop %v82
    %v84 = vmul.f32 %v83, 0.6931472
    %v85 = vmul.f32 -0.5, %v72
    %v86 = vadd.f32 %v85, 1.0
    %v87 = vmul.f32 %v86, %v72
    %v88 = vand.u32 2147483647, %v72
    %vm89 = vcmp.lt.f32.partialorder %v88, 0.0004427343
    %v90 = vsel %vm89, %v87, %v84
    %v91 = vadd.f32 %v63, %v81
    %v92 = vadd.f32 %v64, %v90
    %v93 = vadd.f32 %v57, %v58
    %v94 = vadd.f32 %v91, %v92
    %v95 = vld [vmem:[#allocation2] sm:$0xff]
    %v96 = vadd.f32 %v95, %v93
    %97 = vst [vmem:[#allocation2] sm:$0xff] %v96
    %v98 = vld [vmem:[#allocation3] sm:$0xff]
    %v99 = vadd.f32 %v98, %v94
    %100 = vst [vmem:[#allocation3] sm:$0xff] %v99
    // Predicated region
    $region22: #{tpu_custom_call.1} parent=1 // pred_check
      %p101 = pneg %p43
    $region23: #{tpu_custom_call.1} parent=1 // pred_check_branch
      %103 = sbr.rel (%p101) target = $region25
    $region24: #{tpu_custom_call.1} parent=1 // pred_region
      %v104 = vld [vmem:[#allocation2] sm:$0xff]
      %105 = vadd.xlane.f32.xlu0 %v104
      %v106 = vpop.xlane.xlu0 %105
      %v107 = vld [vmem:[#allocation3] sm:$0xff]
      %108 = vadd.xlane.f32.xlu0 %v107
      %v109 = vpop.xlane.xlu0 %108
      %v110 = vsub.f32 256.0, %v106
      %v111 = vadd.f32 %v106, 1.0
      %v112 = vadd.f32 %v110, 1.0
      %v113 = vadd.f32 %v111, %v112
      %v114 = vadd.f32 %v113, 1.0
      %v115 = vrcp.pop %v112
      %v116 = vmul.f32 %v112, %v115
      %v117 = vsub.f32 1.0, %v116
      %v118 = vmul.f32 %v115, %v117
      %v119 = vadd.f32 %v115, %v118
      %vm120 = vweird.f32 %v112
      %vm121 = vweird.f32 %v115
      %vm122 = vmor %vm120, %vm121
      %v123 = vsel %vm122, %v115, %v119
      %v124 = vand.u32 2147483647, %v112
      %vm125 = vcmp.eq.f32.partialorder %v124, 8.507059e+37
      %v126 = vand.u32 %v112, 2147483648
      %v127 = vor.u32 1.1754944e-38, %v126
      %v128 = vsel %vm125, %v127, %v123
      %v129 = vmul.f32 %v114, %v128
      %v130 = vmul.f32 %v110, %v129
      %v131 = vrcp.pop %v111
      %v132 = vmul.f32 %v111, %v131
      %v133 = vsub.f32 1.0, %v132
      %v134 = vmul.f32 %v131, %v133
      %v135 = vadd.f32 %v131, %v134
      %vm136 = vweird.f32 %v111
      %vm137 = vweird.f32 %v131
      %vm138 = vmor %vm136, %vm137
      %v139 = vsel %vm138, %v131, %v135
      %v140 = vand.u32 2147483647, %v111
      %vm141 = vcmp.eq.f32.partialorder %v140, 8.507059e+37
      %v142 = vand.u32 %v111, 2147483648
      %v143 = vor.u32 1.1754944e-38, %v142
      %v144 = vsel %vm141, %v143, %v139
      %v145 = vmul.f32 %v114, %v144
      %v146 = vmul.f32 %v106, %v145
      %v147 = vadd.f32 %v130, %v146
      %vm148 = vcmask 7168
      %v149 = vsel %vm148, %v109, 0.0
      %150 = vadd.xlane.f32.xlu0 %v149
      %v151 = vpop.xlane.xlu0 %150
      %v152 = vrot.slane %v151, 4
      %v153 = vadd.f32 %v151, %v152
      %v154 = vrot.slane %v153, 2
      %v155 = vadd.f32 %v153, %v154
      %v156 = vrot.slane %v155, 1
      %v157 = vadd.f32 %v155, %v156
      %s158 = vtos %v157
      %v159 = vstv %s158
      %160 = vst [vmem:[#allocation9] sm:$0xff] %v159
      %v161 = vsel %vm148, %v147, 0.0
      %162 = vadd.xlane.f32.xlu0 %v161
      %v163 = vpop.xlane.xlu0 %162
      %v164 = vrot.slane %v163, 4
      %v165 = vadd.f32 %v163, %v164
      %v166 = vrot.slane %v165, 2
      %v167 = vadd.f32 %v165, %v166
      %v168 = vrot.slane %v167, 1
      %v169 = vadd.f32 %v167, %v168
      %s170 = vtos %v169
      %v171 = vstv %s170
      %172 = vst [vmem:[#allocation10] sm:$0xff] %v171
    $region25: #{tpu_custom_call.1} parent=1 // pred_fallthru
      _
    // Predicated region
    $region26: #{tpu_custom_call.1} parent=1 // pred_check
      _
    $region27: #{tpu_custom_call.1} parent=1 // pred_check_branch
      %174 = sbr.rel (0) target = $region29
    $region28: #{tpu_custom_call.1} parent=1 // pred_region
      %176 = vsyncadd [#allocation6], 0
      %s178 = sshll.u32 [#allocation9], 4
      %s179 = int_to_ptr.vmem [resolvable:$true] %s178
      %s180 = sshll.u32 %s2, 4
      %s181 = int_to_ptr.hbm [resolvable:$true] %s180
      %183 = dma.vmem_to_hbm [thread:$0]  %s179, 128, %s181, [#allocation6]
    $region29: #{tpu_custom_call.1} parent=1 // pred_fallthru
      _
    // Predicated region
    $region30: #{tpu_custom_call.1} parent=1 // pred_check
      _
    $region31: #{tpu_custom_call.1} parent=1 // pred_check_branch
      %185 = sbr.rel (0) target = $region33
    $region32: #{tpu_custom_call.1} parent=1 // pred_region
      %187 = vsyncadd [#allocation11], 0
      %s189 = sshll.u32 [#allocation10], 4
      %s190 = int_to_ptr.vmem [resolvable:$true] %s189
      %s191 = sshll.u32 %s3, 4
      %s192 = int_to_ptr.hbm [resolvable:$true] %s191
      %194 = dma.vmem_to_hbm [thread:$0]  %s190, 128, %s192, [#allocation11]
    $region33: #{tpu_custom_call.1} parent=1 // pred_fallthru
      _
    // Predicated region
    $region34: #{tpu_custom_call.1} parent=1 // pred_check
      _
    $region35: #{tpu_custom_call.1} parent=1 // pred_check_branch
      %196 = sbr.rel (0) target = $region37
    $region36: #{tpu_custom_call.1} parent=1 // pred_region
      %198 = dma.done [#allocation6], 128
    $region37: #{tpu_custom_call.1} parent=1 // pred_fallthru
      _
    // Predicated region
    $region38: #{tpu_custom_call.1} parent=1 // pred_check
      _
    $region39: #{tpu_custom_call.1} parent=1 // pred_check_branch
      %200 = sbr.rel (0) target = $region41
    $region40: #{tpu_custom_call.1} parent=1 // pred_region
      %202 = dma.done [#allocation11], 128
    $region41: #{tpu_custom_call.1} parent=1 // pred_fallthru
      _
    %203 = vsyncpa [#allocation5], 1
    %204 = vsyncpa [#allocation8], 1
    %205 = vsyncpa [#allocation6], 1
    %206 = vsyncpa [#allocation11], 1

</llo_original>
